<compile_context>
chip_gen: v7x
topology: tpu7x:2x2x1
jax: 0.10.0
libtpu: 0.0.40
codegen_flags: <defaults>
</compile_context>

<pallas_src>
import functools
import math

import jax
import jax.numpy as jnp
from jax.experimental import pallas as pl
from jax.experimental.pallas import tpu as pltpu


def _round_up(n: int, m: int) -> int:
    return (n + m - 1) // m * m


def _cdiv(a: int, b: int) -> int:
    return -(-a // b)


def _layer_norm_kernel(x_ref, alpha_ref, beta_ref, o_ref, *,
                       eps, embed, use_eup_reciprocal):
    """Torch-style LayerNormalization on a (TM, E) row tile (f32 math)."""
    x = x_ref[...].astype(jnp.float32)                         # (TM, E)

    mean = jnp.sum(x, axis=-1, keepdims=True) * (1.0 / embed)
    centered = x - mean

    # unbiased variance (ddof=1), eps added to std — matches torch x.std(-1)
    # TODO(synk): torch returns NaN for E==1 (0/0); we guard with max(E-1, 1).
    var = jnp.sum(centered * centered, axis=-1, keepdims=True) * (
        1.0 / max(embed - 1, 1))
    denom = jnp.sqrt(var) + eps                                # (TM, 1)

    if use_eup_reciprocal:
        # per-row reciprocal on the EUP slot (free vs. the VALU) on real TPUs
        inv = pl.reciprocal(denom, approx=True)
    else:
        inv = 1.0 / denom

    y = (alpha_ref[...] * inv) * centered + beta_ref[...]
    o_ref[...] = y.astype(o_ref.dtype)


def layer_norm_pallas(x, alpha, beta, *, eps=1e-6, row_tile=None):
    """x: (..., E); alpha/beta: (E,). Returns LayerNormalization(x)."""
    orig_shape = x.shape
    E = int(orig_shape[-1])
    R = int(math.prod(orig_shape[:-1])) if len(orig_shape) > 1 else 1
    x2 = x.reshape(R, E)
    alpha2 = alpha.reshape(1, E).astype(jnp.float32)
    beta2 = beta.reshape(1, E).astype(jnp.float32)

    itemsize = jnp.dtype(x.dtype).itemsize

    # Generation awareness: v7x has only 64 MiB physical VMEM per TensorCore.
    try:
        vmem_cap = int(pltpu.get_tpu_info().vmem_capacity_bytes)
    except Exception:  # pragma: no cover - conservative fallback off-TPU
        vmem_cap = 128 * 1024 * 1024
    small_vmem_chip = vmem_cap <= 64 * 1024 * 1024             # v7x-like

    # Row tile: ~2 MiB of f32 working set per block (measured sweep shows
    # 512 KiB–4 MiB blocks reach 85%+ of HBM roofline); multiple of 8 sublanes.
    target_f32_block_bytes = 2 * 1024 * 1024
    max_tm = max(8, (target_f32_block_bytes // (E * 4)) // 8 * 8)
    if row_tile is not None:                                    # test / override hook
        max_tm = max(8, min(max_tm, _round_up(int(row_tile), 8)))
    TM = min(max_tm, _round_up(R, 8))
    n_blocks = _cdiv(R, TM)                                     # ragged last block OK

    # Deeper input buffering only where it pays: v7x (fast HBM, 2 TCs sharing
    # the work) with a long enough grid. Elsewhere the default double-buffer
    # already saturates bandwidth and deeper buffers just burn VMEM.
    deep_buffer = small_vmem_chip and n_blocks >= 3
    if deep_buffer:
        x_spec = pl.BlockSpec((TM, E), lambda i: (i, 0),
                              pipeline_mode=pl.Buffered(3))
        n_in_buf = 3
    else:
        x_spec = pl.BlockSpec((TM, E), lambda i: (i, 0))
        n_in_buf = 2

    # VMEM budget from the real block dtype: pipelined in/out HBM-side blocks
    # + in-kernel f32 temporaries + params, modest slack, capped v7x-safe.
    hbm_block_bytes = TM * E * itemsize
    f32_block_bytes = TM * E * 4
    vmem_bytes = ((n_in_buf + 2) * hbm_block_bytes      # in bufs + out double-buffer
                  + 6 * f32_block_bytes                 # f32 temporaries / spill room
                  + 4 * E * 4                           # alpha/beta (f32, resident)
                  + (1 << 20))                          # slack
    vmem_limit = int(min(48 * 1024 * 1024, max(16 * 1024 * 1024, vmem_bytes)))

    # pl.reciprocal(approx=True) lowers to the EUP on TPU; plain divide elsewhere.
    use_eup_reciprocal = jax.default_backend() == "tpu"

    kernel = functools.partial(_layer_norm_kernel, eps=eps, embed=E,
                               use_eup_reciprocal=use_eup_reciprocal)

    out = pl.pallas_call(
        kernel,
        out_shape=jax.ShapeDtypeStruct((R, E), x.dtype),   # no padding, no slice
        grid=(n_blocks,),
        in_specs=[
            x_spec,                                      # x row tile (pipelined)
            pl.BlockSpec((1, E), lambda i: (0, 0)),      # alpha (VMEM-resident)
            pl.BlockSpec((1, E), lambda i: (0, 0)),      # beta  (VMEM-resident)
        ],
        out_specs=pl.BlockSpec((TM, E), lambda i: (i, 0)),
        compiler_params=pltpu.CompilerParams(
            dimension_semantics=("parallel",),           # rows shard across TCs
            vmem_limit_bytes=vmem_limit,
        ),
    )(x2, alpha2, beta2)

    return out.reshape(orig_shape)


def decoder_forward(x, encoder_output, src_mask, tgt_mask, layers,
                    alpha, beta, *, eps=1e-6):
    """Decoder.forward: apply the layer stack, then LayerNormalization."""
    # TODO(synk): the decoder layers are opaque modules supplied to __init__
    # (self-attn / cross-attn / FFN blocks) with no definition in the spec;
    # they are applied here as plain JAX callables rather than Pallas kernels.
    for layer in layers:
        x = layer(x, encoder_output, src_mask, tgt_mask)
    return layer_norm_pallas(x, alpha, beta, eps=eps)


def _layer_norm_reference(x, alpha, beta, eps=1e-6):
    xf = x.astype(jnp.float32)
    mean = jnp.mean(xf, axis=-1, keepdims=True)
    var = jnp.sum((xf - mean) ** 2, axis=-1, keepdims=True) / max(x.shape[-1] - 1, 1)
    std = jnp.sqrt(var)
    return (alpha * (xf - mean) / (std + eps) + beta).astype(x.dtype)


if __name__ == "__main__":
    key = jax.random.PRNGKey(0)

    # ---- small shape consistent with the module: batch=2, seq=8, embed=32 ----
    B, S, E = 2, 8, 32
    kx, ke, ka, kb = jax.random.split(key, 4)
    x = jax.random.normal(kx, (B, S, E), dtype=jnp.float32)
    encoder_output = jax.random.normal(ke, (B, S, E), dtype=jnp.float32)
    src_mask = jnp.ones((B, 1, 1, S), dtype=jnp.float32)
    tgt_mask = jnp.ones((B, 1, S, S), dtype=jnp.float32)
    alpha = 1.0 + 0.1 * jax.random.normal(ka, (E,), dtype=jnp.float32)
    beta = 0.05 * jax.random.normal(kb, (E,), dtype=jnp.float32)

    # Stand-ins for the opaque decoder layers (pure JAX callables).
    def make_toy_layer(scale):
        def layer(h, enc, sm, tm):
            return h + scale * jnp.tanh(enc)
        return layer
    layers = [make_toy_layer(0.10), make_toy_layer(0.05)]

    out = decoder_forward(x, encoder_output, src_mask, tgt_mask, layers,
                          alpha, beta)
    out = jax.block_until_ready(out)
    assert out.shape == (B, S, E)

    x_after_layers = x
    for layer in layers:
        x_after_layers = layer(x_after_layers, encoder_output, src_mask, tgt_mask)
    ref = _layer_norm_reference(x_after_layers, alpha, beta)
    # tolerance covers the approximate EUP reciprocal used on real TPUs
    assert jnp.allclose(out, ref, atol=5e-3, rtol=5e-3), "mismatch vs reference (small)"

    # ---- larger shape: default (single large block) + forced multi-block with a
    # ragged last block (1040 rows, TM=256 -> grid=5, 16 valid rows in block 4) ----
    B2, S2, E2 = 2, 520, 128
    kx2, ka2, kb2 = jax.random.split(jax.random.PRNGKey(1), 3)
    x2 = jax.random.normal(kx2, (B2, S2, E2), dtype=jnp.float32)
    alpha2 = 1.0 + 0.1 * jax.random.normal(ka2, (E2,), dtype=jnp.float32)
    beta2 = 0.05 * jax.random.normal(kb2, (E2,), dtype=jnp.float32)
    ref2 = _layer_norm_reference(x2, alpha2, beta2)

    out2a = jax.block_until_ready(layer_norm_pallas(x2, alpha2, beta2))
    assert out2a.shape == (B2, S2, E2)
    assert jnp.allclose(out2a, ref2, atol=5e-3, rtol=5e-3), "mismatch vs reference (big)"

    out2b = jax.block_until_ready(layer_norm_pallas(x2, alpha2, beta2, row_tile=256))
    assert out2b.shape == (B2, S2, E2)
    assert jnp.allclose(out2b, ref2, atol=5e-3, rtol=5e-3), "mismatch vs reference (ragged)"

    print("KERNEL_OK")
</pallas_src>

<mosaic_0001>
module attributes {stable_mosaic.version = 11 : i64} {
  func.func @_layer_norm_kernel(%arg0: i32, %arg1: memref<16x32xf32, #tpu.memory_space<vmem>>, %arg2: memref<1x32xf32, #tpu.memory_space<vmem>>, %arg3: memref<1x32xf32, #tpu.memory_space<vmem>>, %arg4: memref<16x32xf32, #tpu.memory_space<vmem>>) attributes {dimension_semantics = [#tpu.dimension_semantics<parallel>], iteration_bounds = array<i64: 1>, scalar_prefetch = 0 : i64, scratch_operands = 0 : i64, tpu.core_type = #tpu.core_type<tc>, window_params = [{transform_indices = @transform_0, window_bounds = array<i64: 16, 32>}, {pipeline_mode = #tpu.pipeline_mode<synchronous>, transform_indices = @transform_1, window_bounds = array<i64: 1, 32>}, {pipeline_mode = #tpu.pipeline_mode<synchronous>, transform_indices = @transform_2, window_bounds = array<i64: 1, 32>}, {transform_indices = @transform_3, window_bounds = array<i64: 16, 32>}]} {
    %c0 = arith.constant 0 : index
    %c0_0 = arith.constant 0 : index
    %0 = vector.load %arg1[%c0, %c0_0] : memref<16x32xf32, #tpu.memory_space<vmem>>, vector<16x32xf32>
    %cst = arith.constant dense<0.000000e+00> : vector<16xf32>
    %1 = vector.multi_reduction <add>, %0, %cst [1] : vector<16x32xf32> to vector<16xf32>
    %2 = vector.shape_cast %1 : vector<16xf32> to vector<16x1xf32>
    %cst_1 = arith.constant 3.125000e-02 : f32
    %3 = vector.broadcast %cst_1 : f32 to vector<16x1xf32>
    %4 = arith.mulf %2, %3 : vector<16x1xf32>
    %5 = vector.broadcast %4 : vector<16x1xf32> to vector<16x32xf32>
    %6 = arith.subf %0, %5 : vector<16x32xf32>
    %7 = arith.mulf %6, %6 : vector<16x32xf32>
    %cst_2 = arith.constant dense<0.000000e+00> : vector<16xf32>
    %8 = vector.multi_reduction <add>, %7, %cst_2 [1] : vector<16x32xf32> to vector<16xf32>
    %9 = vector.shape_cast %8 : vector<16xf32> to vector<16x1xf32>
    %cst_3 = arith.constant 0.0322580636 : f32
    %10 = vector.broadcast %cst_3 : f32 to vector<16x1xf32>
    %11 = arith.mulf %9, %10 : vector<16x1xf32>
    %12 = math.sqrt %11 : vector<16x1xf32>
    %cst_4 = arith.constant 9.99999997E-7 : f32
    %13 = vector.broadcast %cst_4 : f32 to vector<16x1xf32>
    %14 = arith.addf %12, %13 : vector<16x1xf32>
    %cst_5 = arith.constant 1.000000e+00 : f32
    %15 = vector.broadcast %cst_5 : f32 to vector<16x1xf32>
    %16 = arith.divf %15, %14 : vector<16x1xf32>
    %c0_6 = arith.constant 0 : index
    %c0_7 = arith.constant 0 : index
    %17 = vector.load %arg2[%c0_6, %c0_7] : memref<1x32xf32, #tpu.memory_space<vmem>>, vector<1x32xf32>
    %18 = vector.broadcast %17 : vector<1x32xf32> to vector<16x32xf32>
    %19 = vector.broadcast %16 : vector<16x1xf32> to vector<16x32xf32>
    %20 = arith.mulf %18, %19 : vector<16x32xf32>
    %21 = arith.mulf %20, %6 : vector<16x32xf32>
    %c0_8 = arith.constant 0 : index
    %c0_9 = arith.constant 0 : index
    %22 = vector.load %arg3[%c0_8, %c0_9] : memref<1x32xf32, #tpu.memory_space<vmem>>, vector<1x32xf32>
    %23 = vector.broadcast %22 : vector<1x32xf32> to vector<16x32xf32>
    %24 = arith.addf %21, %23 : vector<16x32xf32>
    %c0_10 = arith.constant 0 : index
    %c0_11 = arith.constant 0 : index
    %25 = vector.load %arg4[%c0_10, %c0_11] : memref<16x32xf32, #tpu.memory_space<vmem>>, vector<16x32xf32>
    tpu.vector_store %arg4[%c0_10, %c0_11], %24 {strides = array<i32>} : memref<16x32xf32, #tpu.memory_space<vmem>>, vector<16x32xf32>,
    return
  }
  func.func @transform_0(%arg0: i32) -> (i32, i32) {
    %c0_i32 = arith.constant 0 : i32
    %c0_i32_0 = arith.constant 0 : i32
    return %arg0, %c0_i32 : i32, i32
  }
  func.func @transform_1(%arg0: i32) -> (i32, i32) {
    %c0_i32 = arith.constant 0 : i32
    %c0_i32_0 = arith.constant 0 : i32
    %c0_i32_1 = arith.constant 0 : i32
    return %c0_i32, %c0_i32_0 : i32, i32
  }
  func.func @transform_2(%arg0: i32) -> (i32, i32) {
    %c0_i32 = arith.constant 0 : i32
    %c0_i32_0 = arith.constant 0 : i32
    %c0_i32_1 = arith.constant 0 : i32
    return %c0_i32, %c0_i32_0 : i32, i32
  }
  func.func @transform_3(%arg0: i32) -> (i32, i32) {
    %c0_i32 = arith.constant 0 : i32
    %c0_i32_0 = arith.constant 0 : i32
    return %arg0, %c0_i32 : i32, i32
  }
}

</mosaic_0001>

<llo_original>
// kernel: tpu_custom_call.1
$region0: #{tpu_custom_call.1}
  #allocation0 [shape = 'u32[]', space=smem, size = 0x4, offset = 0x4, fixed_abs, tag = 'smem constant byte address 0x4 - core index']
  #allocation1 [shape = 'u32[144,128]{1,0:T(1,128)}', space=vmem, size = 0x12000, scoped, tag = 'internal scratch']
  %s0 = inlined_call_operand.hbm [shape: f32[16,32], index: 0, kind: input, shape index: {}]
  %s1 = inlined_call_operand.vmem [shape: f32[1,32], index: 1, kind: input, shape index: {}]
  %s2 = inlined_call_operand.vmem [shape: f32[1,32], index: 2, kind: input, shape index: {}]
  %s3 = inlined_call_operand.hbm [shape: f32[16,32], index: 3, kind: output, shape index: {}]
  %s4 = sld [smem:[#allocation0]]
  $region26: #{tpu_custom_call.1} parent=0
    _
  %s6 = ssub.s32 1, %s4
  %s7 = scalar_select 0, %s6, %s4
  $region1: #{tpu_custom_call.1} parent=0
    #allocation2 [shape = 'u8[8192]{0}', space=vmem, size = 0x2000, scoped, tag = 'input window, operand 0, single buffered']
    #allocation3 [shape = 's32[1]{0}', space=sflag, size = 0x4, scoped, tag = 'scoped memory for tpu_custom_call.1']
    #allocation4 [shape = 's32[1]{0}', space=sflag, size = 0x4, scoped, tag = 'scoped memory for tpu_custom_call.1']
    #allocation5 [shape = 'u8[8192]{0}', space=vmem, size = 0x2000, scoped, tag = 'output window, operand 0, single buffered']
    %8 = vsyncpa [#allocation3], 0
    %9 = vsyncpa [#allocation4], 0
    // Predicated region
    $region2: #{tpu_custom_call.1} parent=1 // pred_check
      _
    $region3: #{tpu_custom_call.1} parent=1 // pred_check_branch
      %11 = sbr.rel (0) target = $region5
    $region4: #{tpu_custom_call.1} parent=1 // pred_region
      %s13 = ssub.s32 256, 256
      %14 = vsyncadd [#allocation3], %s13
      %s15 = sshll.u32 [#allocation2], 4
      %s16 = int_to_ptr.vmem [resolvable:$true] %s15
      %21 = dma.hbm_to_vmem [thread:$0]  %s0, 256, %s16, [#allocation3], 128, 128, 8
    $region5: #{tpu_custom_call.1} parent=1 // pred_fallthru
      _
    // Predicated region
    $region6: #{tpu_custom_call.1} parent=1 // pred_check
      _
    $region7: #{tpu_custom_call.1} parent=1 // pred_check_branch
      %23 = sbr.rel (0) target = $region9
    $region8: #{tpu_custom_call.1} parent=1 // pred_region
      _
    $region9: #{tpu_custom_call.1} parent=1 // pred_fallthru
      _
    // Predicated region
    $region10: #{tpu_custom_call.1} parent=1 // pred_check
      _
    $region11: #{tpu_custom_call.1} parent=1 // pred_check_branch
      %25 = sbr.rel (0) target = $region13
    $region12: #{tpu_custom_call.1} parent=1 // pred_region
      _
    $region13: #{tpu_custom_call.1} parent=1 // pred_fallthru
      _
    // Predicated region
    $region14: #{tpu_custom_call.1} parent=1 // pred_check
      _
    $region15: #{tpu_custom_call.1} parent=1 // pred_check_branch
      %27 = sbr.rel (0) target = $region17
    $region16: #{tpu_custom_call.1} parent=1 // pred_region
      %28 = dma.done [#allocation3], 256
    $region17: #{tpu_custom_call.1} parent=1 // pred_fallthru
      _
    %v29 = vld [vmem:[#allocation2] sm:$0xff]
    %v30 = vld [vmem:[#allocation2 + $0x8] sm:$0xff]
    %vm31 = vcmask 261120
    %v32 = vsel %vm31, %v29, 0.0
    %33 = vadd.xlane.f32.xlu0 %v32
    %v34 = vpop.xlane.xlu0 %33
    %v35 = vsel %vm31, %v30, 0.0
    %36 = vadd.xlane.f32.xlu0 %v35
    %v37 = vpop.xlane.xlu0 %36
    %v38 = vmul.f32 %v34, 0.03125
    %v39 = vmul.f32 %v37, 0.03125
    %v40 = vsub.f32 %v29, %v38
    %v41 = vsub.f32 %v30, %v39
    %v42 = vmul.f32 %v40, %v40
    %v43 = vmul.f32 %v41, %v41
    %v44 = vsel %vm31, %v42, 0.0
    %45 = vadd.xlane.f32.xlu0 %v44
    %v46 = vpop.xlane.xlu0 %45
    %v47 = vsel %vm31, %v43, 0.0
    %48 = vadd.xlane.f32.xlu0 %v47
    %v49 = vpop.xlane.xlu0 %48
    %v50 = vmul.f32 %v46, 0.032258064
    %v51 = vmul.f32 %v49, 0.032258064
    %v52 = vrsqrt.pop %v50
    %v53 = vmul.f32 %v50, %v52
    %vm54 = vcmp.eq.f32.partialorder %v50, inf
    %v55 = vsel %vm54, %v50, %v53
    %vm56 = vcmp.eq.f32.partialorder %v50, 0.0
    %v57 = vand.u32 %v50, 2147483648
    %v58 = vsel %vm56, %v57, %v55
    %v59 = vrsqrt.pop %v51
    %v60 = vmul.f32 %v51, %v59
    %vm61 = vcmp.eq.f32.partialorder %v51, inf
    %v62 = vsel %vm61, %v51, %v60
    %vm63 = vcmp.eq.f32.partialorder %v51, 0.0
    %v64 = vand.u32 %v51, 2147483648
    %v65 = vsel %vm63, %v64, %v62
    %v66 = vadd.f32 %v58, 1e-06
    %v67 = vadd.f32 %v65, 1e-06
    %v68 = vrcp.pop %v66
    %v69 = vmul.f32 1.0, %v68
    %v70 = vrcp.pop %v67
    %v71 = vmul.f32 1.0, %v70
    %v72 = vld [vmem:[%s1] sm:$0x1]
    %v74 = vlaneseq
    %v75 = vshrl.u32 %v74, 7
    %v76 = vsub.s32 0, %v75
    %v77 = vrot.slane %v72, %v76
    %v79 = vmul.f32 %v77, %v69
    %v80 = vmul.f32 %v77, %v71
    %v81 = vmul.f32 %v79, %v40
    %v82 = vmul.f32 %v80, %v41
    %v83 = vld [vmem:[%s2] sm:$0x1]
    %v85 = vlaneseq
    %v86 = vshrl.u32 %v85, 7
    %v87 = vsub.s32 0, %v86
    %v88 = vrot.slane %v83, %v87
    %v90 = vadd.f32 %v81, %v88
    %v91 = vadd.f32 %v82, %v88
    %92 = vst.msk [vmem:[#allocation5] sm:$0xff] %vm31, %v90
    %93 = vst.msk [vmem:[#allocation5 + $0x8] sm:$0xff] %vm31, %v91
    // Predicated region
    $region18: #{tpu_custom_call.1} parent=1 // pred_check
      _
    $region19: #{tpu_custom_call.1} parent=1 // pred_check_branch
      %95 = sbr.rel (0) target = $region21
    $region20: #{tpu_custom_call.1} parent=1 // pred_region
      %s97 = ssub.s32 256, 256
      %98 = vsyncadd [#allocation4], %s97
      %s99 = sshll.u32 [#allocation5], 4
      %s100 = int_to_ptr.vmem [resolvable:$true] %s99
      %105 = dma.vmem_to_hbm [thread:$0]  %s100, 256, %s3, [#allocation4], 128, 128, 8
    $region21: #{tpu_custom_call.1} parent=1 // pred_fallthru
      _
    // Predicated region
    $region22: #{tpu_custom_call.1} parent=1 // pred_check
      _
    $region23: #{tpu_custom_call.1} parent=1 // pred_check_branch
      %107 = sbr.rel (0) target = $region25
    $region24: #{tpu_custom_call.1} parent=1 // pred_region
      %108 = dma.done [#allocation4], 256
    $region25: #{tpu_custom_call.1} parent=1 // pred_fallthru
      _
    %109 = vsyncpa [#allocation3], 1
    %110 = vsyncpa [#allocation4], 1

</llo_original>
